<compile_context>
chip_gen: v5e
topology: v5e:2x2
jax: 0.10.0
libtpu: 0.0.40
codegen_flags: <defaults>
</compile_context>

<pallas_src>
import functools

import jax
import jax.numpy as jnp
from jax.experimental import pallas as pl
from jax.experimental.pallas import tpu as pltpu

IN_FEATURES = 128
OUT_FEATURES = 64


def _model_front_kernel(x1_ref, x2_ref, w_ref, b_ref, out1_ref, out2_ref, out3_ref):
    # x1/x2: (bm, 128); w: (128, 64); b: (1, 64)
    w = w_ref[...]
    b = b_ref[...]
    z1 = jnp.dot(x1_ref[...], w, preferred_element_type=jnp.float32) + b  # (bm, 64)
    z2 = jnp.dot(x2_ref[...], w, preferred_element_type=jnp.float32) + b  # (bm, 64)
    out1_ref[...] = jnp.maximum(z1, 0.0).astype(out1_ref.dtype)   # relu(linear(inp1))
    out2_ref[...] = jnp.maximum(z2, 0.0).astype(out2_ref.dtype)   # relu(linear(inp2))
    out3_ref[...] = jax.nn.sigmoid(z2).astype(out3_ref.dtype)     # sigmoid(linear(inp2))


@functools.partial(jax.jit, static_argnames=("block_m",))
def model_front(inp1, inp2, weight, bias, *, block_m=4096):
    """inp1, inp2: [B, 128] f32; weight: [64, 128] f32 (PyTorch layout); bias: [64] f32.

    Returns (relu(linear(inp1)), relu(linear(inp2)), sigmoid(linear(inp2))),
    each [B, 64] f32.
    """
    B = inp1.shape[0]
    w_t = weight.T.astype(jnp.float32)                 # [128, 64] — real weight, no padding
    b_row = bias.astype(jnp.float32).reshape(1, OUT_FEATURES)

    # Batch tile: big enough to amortize the ~0.35 us per-grid-step overhead,
    # small enough that the double-buffered working set stays well inside the
    # 32 MiB scoped VMEM limit (safe on v5e/v6e and on v7x's 64 MiB physical).
    bm = min(block_m, B)
    # If the whole batch would be one big tile, split it so both TensorCores
    # (v7x megacore) get at least one tile of work.  Keep sublanes aligned.
    if B >= 2048 and bm >= B:
        bm = ((pl.cdiv(B, 2) + 7) // 8) * 8
    grid = (pl.cdiv(B, bm),)

    out_sd = jax.ShapeDtypeStruct((B, OUT_FEATURES), jnp.float32)
    itemsize = 4
    cost = pl.CostEstimate(
        flops=2 * 2 * B * IN_FEATURES * OUT_FEATURES,            # two linears
        transcendentals=B * OUT_FEATURES,                        # sigmoid exp (z2 only)
        bytes_accessed=(2 * B * IN_FEATURES * itemsize           # inputs
                        + 3 * B * OUT_FEATURES * itemsize        # three outputs
                        + (IN_FEATURES * OUT_FEATURES + OUT_FEATURES) * itemsize),
    )

    out1, out2, out3 = pl.pallas_call(
        _model_front_kernel,
        out_shape=(out_sd, out_sd, out_sd),
        grid=grid,
        in_specs=[
            pl.BlockSpec((bm, IN_FEATURES), lambda i: (i, 0)),
            pl.BlockSpec((bm, IN_FEATURES), lambda i: (i, 0)),
            pl.BlockSpec((IN_FEATURES, OUT_FEATURES), lambda i: (0, 0)),  # VMEM-resident
            pl.BlockSpec((1, OUT_FEATURES), lambda i: (0, 0)),            # VMEM-resident
        ],
        out_specs=(
            pl.BlockSpec((bm, OUT_FEATURES), lambda i: (i, 0)),
            pl.BlockSpec((bm, OUT_FEATURES), lambda i: (i, 0)),
            pl.BlockSpec((bm, OUT_FEATURES), lambda i: (i, 0)),
        ),
        compiler_params=pltpu.CompilerParams(
            dimension_semantics=("parallel",),          # shard batch tiles across TCs
            vmem_limit_bytes=32 * 1024 * 1024,          # safe on v5e/v6e/v7x
        ),
        cost_estimate=cost,
    )(inp1, inp2, w_t, b_row)

    return out1, out2, out3


if __name__ == "__main__":
    key = jax.random.PRNGKey(0)
    k_w, k_b, k_x1, k_x2 = jax.random.split(key, 4)

    B = 16  # small batch (multiple of 8 sublanes)

    # Deterministic parameter init, PyTorch nn.Linear(128, 64) layout.
    bound = 1.0 / (IN_FEATURES ** 0.5)
    weight = jax.random.uniform(
        k_w, (OUT_FEATURES, IN_FEATURES), jnp.float32, -bound, bound)
    bias = jax.random.uniform(
        k_b, (OUT_FEATURES,), jnp.float32, -bound, bound)

    inp1 = jax.random.normal(k_x1, (B, IN_FEATURES), jnp.float32)
    inp2 = jax.random.normal(k_x2, (B, IN_FEATURES), jnp.float32)

    out1, out2, out3 = jax.block_until_ready(
        model_front(inp1, inp2, weight, bias))

    # Reference check in plain JAX.
    w_t = weight.T
    z1 = inp1 @ w_t + bias
    z2 = inp2 @ w_t + bias
    ref1 = jnp.maximum(z1, 0.0)
    ref2 = jnp.maximum(z2, 0.0)
    ref3 = jax.nn.sigmoid(z2)
    assert out1.shape == (B, OUT_FEATURES)
    assert out2.shape == (B, OUT_FEATURES)
    assert out3.shape == (B, OUT_FEATURES)
    assert jnp.allclose(out1, ref1, atol=1e-5), "out1 mismatch"
    assert jnp.allclose(out2, ref2, atol=1e-5), "out2 mismatch"
    assert jnp.allclose(out3, ref3, atol=1e-5), "out3 mismatch"

    print("KERNEL_OK")
</pallas_src>

<mosaic_0001>
module attributes {stable_mosaic.version = 11 : i64} {
  func.func @_model_front_kernel(%arg0: i32, %arg1: memref<16x128xf32, #tpu.memory_space<vmem>>, %arg2: memref<16x128xf32, #tpu.memory_space<vmem>>, %arg3: memref<128x64xf32, #tpu.memory_space<vmem>>, %arg4: memref<1x64xf32, #tpu.memory_space<vmem>>, %arg5: memref<16x64xf32, #tpu.memory_space<vmem>>, %arg6: memref<16x64xf32, #tpu.memory_space<vmem>>, %arg7: memref<16x64xf32, #tpu.memory_space<vmem>>) attributes {dimension_semantics = [#tpu.dimension_semantics<parallel>], iteration_bounds = array<i64: 1>, scalar_prefetch = 0 : i64, scratch_operands = 0 : i64, tpu.core_type = #tpu.core_type<tc>, window_params = [{transform_indices = @transform_0, window_bounds = array<i64: 16, 128>}, {transform_indices = @transform_1, window_bounds = array<i64: 16, 128>}, {pipeline_mode = #tpu.pipeline_mode<synchronous>, transform_indices = @transform_2, window_bounds = array<i64: 128, 64>}, {pipeline_mode = #tpu.pipeline_mode<synchronous>, transform_indices = @transform_3, window_bounds = array<i64: 1, 64>}, {transform_indices = @transform_4, window_bounds = array<i64: 16, 64>}, {transform_indices = @transform_5, window_bounds = array<i64: 16, 64>}, {transform_indices = @transform_6, window_bounds = array<i64: 16, 64>}]} {
    %c0 = arith.constant 0 : index
    %c0_0 = arith.constant 0 : index
    %0 = vector.load %arg3[%c0, %c0_0] : memref<128x64xf32, #tpu.memory_space<vmem>>, vector<128x64xf32>
    %c0_1 = arith.constant 0 : index
    %c0_2 = arith.constant 0 : index
    %1 = vector.load %arg4[%c0_1, %c0_2] : memref<1x64xf32, #tpu.memory_space<vmem>>, vector<1x64xf32>
    %c0_3 = arith.constant 0 : index
    %c0_4 = arith.constant 0 : index
    %2 = vector.load %arg1[%c0_3, %c0_4] : memref<16x128xf32, #tpu.memory_space<vmem>>, vector<16x128xf32>
    %cst = arith.constant dense<0.000000e+00> : vector<16x64xf32>
    %3 = tpu.matmul %2, %0, %cst {dimension_numbers = #tpu.dot_dimension_numbers<[1], [0], [0], [1], [0, 0, 1, 1], [], []>} : vector<16x128xf32>, vector<128x64xf32>, vector<16x64xf32> -> vector<16x64xf32>
    %4 = vector.broadcast %1 : vector<1x64xf32> to vector<16x64xf32>
    %5 = arith.addf %3, %4 : vector<16x64xf32>
    %c0_5 = arith.constant 0 : index
    %c0_6 = arith.constant 0 : index
    %6 = vector.load %arg2[%c0_5, %c0_6] : memref<16x128xf32, #tpu.memory_space<vmem>>, vector<16x128xf32>
    %cst_7 = arith.constant dense<0.000000e+00> : vector<16x64xf32>
    %7 = tpu.matmul %6, %0, %cst_7 {dimension_numbers = #tpu.dot_dimension_numbers<[1], [0], [0], [1], [0, 0, 1, 1], [], []>} : vector<16x128xf32>, vector<128x64xf32>, vector<16x64xf32> -> vector<16x64xf32>
    %8 = vector.broadcast %1 : vector<1x64xf32> to vector<16x64xf32>
    %9 = arith.addf %7, %8 : vector<16x64xf32>
    %cst_8 = arith.constant 0.000000e+00 : f32
    %10 = vector.broadcast %cst_8 : f32 to vector<16x64xf32>
    %11 = arith.maximumf %5, %10 : vector<16x64xf32>
    %c0_9 = arith.constant 0 : index
    %c0_10 = arith.constant 0 : index
    %12 = vector.load %arg5[%c0_9, %c0_10] : memref<16x64xf32, #tpu.memory_space<vmem>>, vector<16x64xf32>
    tpu.vector_store %arg5[%c0_9, %c0_10], %11 {strides = array<i32>} : memref<16x64xf32, #tpu.memory_space<vmem>>, vector<16x64xf32>,
    %cst_11 = arith.constant 0.000000e+00 : f32
    %13 = vector.broadcast %cst_11 : f32 to vector<16x64xf32>
    %14 = arith.maximumf %9, %13 : vector<16x64xf32>
    %c0_12 = arith.constant 0 : index
    %c0_13 = arith.constant 0 : index
    %15 = vector.load %arg6[%c0_12, %c0_13] : memref<16x64xf32, #tpu.memory_space<vmem>>, vector<16x64xf32>
    tpu.vector_store %arg6[%c0_12, %c0_13], %14 {strides = array<i32>} : memref<16x64xf32, #tpu.memory_space<vmem>>, vector<16x64xf32>,
    %16 = arith.negf %9 : vector<16x64xf32>
    %17 = math.exp %16 : vector<16x64xf32>
    %cst_14 = arith.constant 1.000000e+00 : f32
    %18 = vector.broadcast %cst_14 : f32 to vector<16x64xf32>
    %19 = arith.addf %18, %17 : vector<16x64xf32>
    %20 = arith.divf %18, %19 : vector<16x64xf32>
    %c0_15 = arith.constant 0 : index
    %c0_16 = arith.constant 0 : index
    %21 = vector.load %arg7[%c0_15, %c0_16] : memref<16x64xf32, #tpu.memory_space<vmem>>, vector<16x64xf32>
    tpu.vector_store %arg7[%c0_15, %c0_16], %20 {strides = array<i32>} : memref<16x64xf32, #tpu.memory_space<vmem>>, vector<16x64xf32>,
    return
  }
  func.func @transform_0(%arg0: i32) -> (i32, i32) {
    %c0_i32 = arith.constant 0 : i32
    %c0_i32_0 = arith.constant 0 : i32
    return %arg0, %c0_i32 : i32, i32
  }
  func.func @transform_1(%arg0: i32) -> (i32, i32) {
    %c0_i32 = arith.constant 0 : i32
    %c0_i32_0 = arith.constant 0 : i32
    return %arg0, %c0_i32 : i32, i32
  }
  func.func @transform_2(%arg0: i32) -> (i32, i32) {
    %c0_i32 = arith.constant 0 : i32
    %c0_i32_0 = arith.constant 0 : i32
    %c0_i32_1 = arith.constant 0 : i32
    return %c0_i32, %c0_i32_0 : i32, i32
  }
  func.func @transform_3(%arg0: i32) -> (i32, i32) {
    %c0_i32 = arith.constant 0 : i32
    %c0_i32_0 = arith.constant 0 : i32
    %c0_i32_1 = arith.constant 0 : i32
    return %c0_i32, %c0_i32_0 : i32, i32
  }
  func.func @transform_4(%arg0: i32) -> (i32, i32) {
    %c0_i32 = arith.constant 0 : i32
    %c0_i32_0 = arith.constant 0 : i32
    return %arg0, %c0_i32 : i32, i32
  }
  func.func @transform_5(%arg0: i32) -> (i32, i32) {
    %c0_i32 = arith.constant 0 : i32
    %c0_i32_0 = arith.constant 0 : i32
    return %arg0, %c0_i32 : i32, i32
  }
  func.func @transform_6(%arg0: i32) -> (i32, i32) {
    %c0_i32 = arith.constant 0 : i32
    %c0_i32_0 = arith.constant 0 : i32
    return %arg0, %c0_i32 : i32, i32
  }
}

</mosaic_0001>

<llo_original>
// kernel: model_front.1
$region0: #{model_front.1}
  #allocation0 [shape = 'u32[]', space=smem, size = 0x4, offset = 0x4, fixed_abs, tag = 'smem constant byte address 0x4 - core index']
  #allocation1 [shape = 'u32[72,128]{1,0:T(1,128)}', space=vmem, size = 0x9000, scoped, tag = 'internal scratch']
  %s0 = inlined_call_operand.vmem [shape: f32[16,128], index: 0, kind: input, shape index: {}]
  %s1 = inlined_call_operand.vmem [shape: f32[16,128], index: 1, kind: input, shape index: {}]
  %s2 = inlined_call_operand.vmem [shape: f32[128,64], index: 2, kind: input, shape index: {}]
  %s3 = inlined_call_operand.vmem [shape: f32[1,64], index: 3, kind: input, shape index: {}]
  %s4 = inlined_call_operand.hbm [shape: f32[16,64], index: 4, kind: output, shape index: {0}]
  %s5 = inlined_call_operand.hbm [shape: f32[16,64], index: 5, kind: output, shape index: {1}]
  %s6 = inlined_call_operand.hbm [shape: f32[16,64], index: 6, kind: output, shape index: {2}]
  %7 = xla_tuple %s4, %s5, %s6
  %s8 = sld [smem:[#allocation0]]
  $region42: #{model_front.1} parent=0
    _
  %s10 = ssub.s32 1, %s8
  %s11 = scalar_select 0, %s10, %s8
  $region1: #{model_front.1} parent=0
    #allocation2 [shape = 'u8[8192]{0}', space=vmem, size = 0x2000, scoped, tag = 'output window, operand 0, single buffered']
    #allocation3 [shape = 's32[1]{0}', space=sflag, size = 0x4, scoped, tag = 'scoped memory for model_front.1']
    #allocation4 [shape = 'u8[8192]{0}', space=vmem, size = 0x2000, scoped, tag = 'output window, operand 1, single buffered']
    #allocation5 [shape = 's32[1]{0}', space=sflag, size = 0x4, scoped, tag = 'scoped memory for model_front.1']
    #allocation6 [shape = 'u8[8192]{0}', space=vmem, size = 0x2000, scoped, tag = 'output window, operand 2, single buffered']
    %12 = vsyncpa [#allocation3], 0
    %13 = vsyncpa [#allocation5], 0
    // Predicated region
    $region2: #{model_front.1} parent=1 // pred_check
      _
    $region3: #{model_front.1} parent=1 // pred_check_branch
      %15 = sbr.rel (0) target = $region5
    $region4: #{model_front.1} parent=1 // pred_region
      _
    $region5: #{model_front.1} parent=1 // pred_fallthru
      _
    // Predicated region
    $region6: #{model_front.1} parent=1 // pred_check
      _
    $region7: #{model_front.1} parent=1 // pred_check_branch
      %17 = sbr.rel (0) target = $region9
    $region8: #{model_front.1} parent=1 // pred_region
      _
    $region9: #{model_front.1} parent=1 // pred_fallthru
      _
    // Predicated region
    $region10: #{model_front.1} parent=1 // pred_check
      _
    $region11: #{model_front.1} parent=1 // pred_check_branch
      %19 = sbr.rel (0) target = $region13
    $region12: #{model_front.1} parent=1 // pred_region
      _
    $region13: #{model_front.1} parent=1 // pred_fallthru
      _
    // Predicated region
    $region14: #{model_front.1} parent=1 // pred_check
      _
    $region15: #{model_front.1} parent=1 // pred_check_branch
      %21 = sbr.rel (0) target = $region17
    $region16: #{model_front.1} parent=1 // pred_region
      _
    $region17: #{model_front.1} parent=1 // pred_fallthru
      _
    %v22 = vld [vmem:[%s2] sm:$0xff]
    %v23 = vld [vmem:[%s2 + $0x8] sm:$0xff]
    %v24 = vld [vmem:[%s2 + $0x10] sm:$0xff]
    %v25 = vld [vmem:[%s2 + $0x18] sm:$0xff]
    %v26 = vld [vmem:[%s2 + $0x20] sm:$0xff]
    %v27 = vld [vmem:[%s2 + $0x28] sm:$0xff]
    %v28 = vld [vmem:[%s2 + $0x30] sm:$0xff]
    %v29 = vld [vmem:[%s2 + $0x38] sm:$0xff]
    %v30 = vld [vmem:[%s2 + $0x40] sm:$0xff]
    %v31 = vld [vmem:[%s2 + $0x48] sm:$0xff]
    %v32 = vld [vmem:[%s2 + $0x50] sm:$0xff]
    %v33 = vld [vmem:[%s2 + $0x58] sm:$0xff]
    %v34 = vld [vmem:[%s2 + $0x60] sm:$0xff]
    %v35 = vld [vmem:[%s2 + $0x68] sm:$0xff]
    %v36 = vld [vmem:[%s2 + $0x70] sm:$0xff]
    %v37 = vld [vmem:[%s2 + $0x78] sm:$0xff]
    %v38 = vld [vmem:[%s3] sm:$0x1]
    %v39 = vld [vmem:[%s0] sm:$0xff]
    %v40 = vld [vmem:[%s0 + $0x8] sm:$0xff]
    %v42 = vperm.slane %v38, 0
    %44 = vmatpush.msra.mxu0 %v37
    %45 = vmatpush.msra.mxu0 %v36
    %46 = vmatpush.msra.mxu0 %v35
    %47 = vmatpush.msra.mxu0 %v34
    %48 = vmatpush.msra.mxu0 %v33
    %49 = vmatpush.msra.mxu0 %v32
    %50 = vmatpush.msra.mxu0 %v31
    %51 = vmatpush.msra.mxu0 %v30
    %52 = vmatpush.msra.mxu0 %v29
    %53 = vmatpush.msra.mxu0 %v28
    %54 = vmatpush.msra.mxu0 %v27
    %55 = vmatpush.msra.mxu0 %v26
    %56 = vmatpush.msra.mxu0 %v25
    %57 = vmatpush.msra.mxu0 %v24
    %58 = vmatpush.msra.mxu0 %v23
    %59 = vmatpush.msra.mxu0 %v22
    %60 = vmatmul.f32.gmra.mxu0 %v39
    %v61 = vpop.f32.mrf.mxu0
    %v62 = vadd.f32 %v42, %v61
    %63 = vmatmul.f32.gmra.mxu0 %v40
    %v64 = vpop.f32.mrf.mxu0
    %v65 = vadd.f32 %v42, %v64
    %66 = vdwg.mxu0
    %v67 = vld [vmem:[%s1] sm:$0xff]
    %v68 = vld [vmem:[%s1 + $0x8] sm:$0xff]
    %69 = vmatpush.msra.mxu0 %v37
    %70 = vmatpush.msra.mxu0 %v36
    %71 = vmatpush.msra.mxu0 %v35
    %72 = vmatpush.msra.mxu0 %v34
    %73 = vmatpush.msra.mxu0 %v33
    %74 = vmatpush.msra.mxu0 %v32
    %75 = vmatpush.msra.mxu0 %v31
    %76 = vmatpush.msra.mxu0 %v30
    %77 = vmatpush.msra.mxu0 %v29
    %78 = vmatpush.msra.mxu0 %v28
    %79 = vmatpush.msra.mxu0 %v27
    %80 = vmatpush.msra.mxu0 %v26
    %81 = vmatpush.msra.mxu0 %v25
    %82 = vmatpush.msra.mxu0 %v24
    %83 = vmatpush.msra.mxu0 %v23
    %84 = vmatpush.msra.mxu0 %v22
    %85 = vmatmul.f32.gmra.mxu0 %v67
    %v86 = vpop.f32.mrf.mxu0
    %v87 = vadd.f32 %v42, %v86
    %88 = vmatmul.f32.gmra.mxu0 %v68
    %v89 = vpop.f32.mrf.mxu0
    %v90 = vadd.f32 %v42, %v89
    %91 = vdwg.mxu0
    %v92 = vmax.f32 %v62, 0.0
    %v93 = vmax.f32 %v65, 0.0
    %vm94 = vcmask 523264
    %95 = vst.msk [vmem:[#allocation2] sm:$0xff] %vm94, %v92
    %96 = vst.msk [vmem:[#allocation2 + $0x8] sm:$0xff] %vm94, %v93
    %v97 = vmax.f32 %v87, 0.0
    %v98 = vmax.f32 %v90, 0.0
    %99 = vst.msk [vmem:[#allocation4] sm:$0xff] %vm94, %v97
    %100 = vst.msk [vmem:[#allocation4 + $0x8] sm:$0xff] %vm94, %v98
    %v101 = vxor.u32 %v87, 2147483648
    %v102 = vxor.u32 %v90, 2147483648
    %v103 = vmul.f32 %v101, 1.442695
    %v104 = vpow.pop %v103
    %v105 = vmul.f32 %v102, 1.442695
    %v106 = vpow.pop %v105
    %v107 = vadd.f32 %v104, 1.0
    %v108 = vadd.f32 %v106, 1.0
    %v109 = vrcp.pop %v107
    %v110 = vmul.f32 %v107, %v109
    %v111 = vsub.f32 1.0, %v110
    %v112 = vmul.f32 %v109, %v111
    %v113 = vadd.f32 %v109, %v112
    %vm114 = vweird.f32 %v107
    %vm115 = vweird.f32 %v109
    %vm116 = vmor %vm114, %vm115
    %v117 = vsel %vm116, %v109, %v113
    %v118 = vand.u32 2147483647, %v107
    %vm119 = vcmp.eq.f32.partialorder %v118, 8.507059e+37
    %v120 = vand.u32 %v107, 2147483648
    %v121 = vor.u32 1.1754944e-38, %v120
    %v122 = vsel %vm119, %v121, %v117
    %v123 = vmul.f32 1.0, %v122
    %v124 = vrcp.pop %v108
    %v125 = vmul.f32 %v108, %v124
    %v126 = vsub.f32 1.0, %v125
    %v127 = vmul.f32 %v124, %v126
    %v128 = vadd.f32 %v124, %v127
    %vm129 = vweird.f32 %v108
    %vm130 = vweird.f32 %v124
    %vm131 = vmor %vm129, %vm130
    %v132 = vsel %vm131, %v124, %v128
    %v133 = vand.u32 2147483647, %v108
    %vm134 = vcmp.eq.f32.partialorder %v133, 8.507059e+37
    %v135 = vand.u32 %v108, 2147483648
    %v136 = vor.u32 1.1754944e-38, %v135
    %v137 = vsel %vm134, %v136, %v132
    %v138 = vmul.f32 1.0, %v137
    %139 = vst.msk [vmem:[#allocation6] sm:$0xff] %vm94, %v123
    %140 = vst.msk [vmem:[#allocation6 + $0x8] sm:$0xff] %vm94, %v138
    // Predicated region
    $region18: #{model_front.1} parent=1 // pred_check
      _
    $region19: #{model_front.1} parent=1 // pred_check_branch
      %142 = sbr.rel (0) target = $region21
    $region20: #{model_front.1} parent=1 // pred_region
      %144 = vsyncadd [#allocation3], 0
      %s145 = sshll.u32 [#allocation2], 4
      %s146 = int_to_ptr.vmem [resolvable:$true] %s145
      %s147 = sshll.u32 %s4, 4
      %s148 = int_to_ptr.hbm [resolvable:$true] %s147
      %153 = dma.vmem_to_hbm [thread:$0]  %s146, 256, %s148, [#allocation3], 128, 128, 8
    $region21: #{model_front.1} parent=1 // pred_fallthru
      _
    // Predicated region
    $region22: #{model_front.1} parent=1 // pred_check
      _
    $region23: #{model_front.1} parent=1 // pred_check_branch
      %155 = sbr.rel (0) target = $region25
    $region24: #{model_front.1} parent=1 // pred_region
      %157 = vsyncadd [#allocation5], 0
      %s158 = sshll.u32 [#allocation4], 4
      %s159 = int_to_ptr.vmem [resolvable:$true] %s158
      %s160 = sshll.u32 %s5, 4
      %s161 = int_to_ptr.hbm [resolvable:$true] %s160
      %166 = dma.vmem_to_hbm [thread:$0]  %s159, 256, %s161, [#allocation5], 128, 128, 8
    $region25: #{model_front.1} parent=1 // pred_fallthru
      _
    // Predicated region
    $region26: #{model_front.1} parent=1 // pred_check
      _
    $region27: #{model_front.1} parent=1 // pred_check_branch
      %168 = sbr.rel (0) target = $region29
    $region28: #{model_front.1} parent=1 // pred_region
      %170 = vsyncadd [#allocation5], 0
      %s171 = sshll.u32 [#allocation6], 4
      %s172 = int_to_ptr.vmem [resolvable:$true] %s171
      %s173 = sshll.u32 %s6, 4
      %s174 = int_to_ptr.hbm [resolvable:$true] %s173
      %179 = dma.vmem_to_hbm [thread:$0]  %s172, 256, %s174, [#allocation5], 128, 128, 8
    $region29: #{model_front.1} parent=1 // pred_fallthru
      _
    // Predicated region
    $region30: #{model_front.1} parent=1 // pred_check
      _
    $region31: #{model_front.1} parent=1 // pred_check_branch
      %181 = sbr.rel (0) target = $region33
    $region32: #{model_front.1} parent=1 // pred_region
      %183 = dma.done [#allocation3], 256
    $region33: #{model_front.1} parent=1 // pred_fallthru
      _
    // Predicated region
    $region34: #{model_front.1} parent=1 // pred_check
      _
    $region35: #{model_front.1} parent=1 // pred_check_branch
      %185 = sbr.rel (0) target = $region37
    $region36: #{model_front.1} parent=1 // pred_region
      %187 = dma.done [#allocation5], 256
    $region37: #{model_front.1} parent=1 // pred_fallthru
      _
    // Predicated region
    $region38: #{model_front.1} parent=1 // pred_check
      _
    $region39: #{model_front.1} parent=1 // pred_check_branch
      %189 = sbr.rel (0) target = $region41
    $region40: #{model_front.1} parent=1 // pred_region
      %191 = dma.done [#allocation5], 256
    $region41: #{model_front.1} parent=1 // pred_fallthru
      _
    %192 = vsyncpa [#allocation3], 1
    %193 = vsyncpa [#allocation5], 1

</llo_original>
